<compile_context>
chip_gen: v7x
topology: tpu7x:2x2x1
jax: 0.10.0
libtpu: 0.0.40
codegen_flags: <defaults>
</compile_context>

<pallas_src>
import jax
import jax.numpy as jnp
from jax.experimental import pallas as pl
from jax.experimental.pallas import tpu as pltpu


def _pretrain_head_kernel(x_ref, w_ref, b_ref, o_ref):
    # x_ref: (1, nvars, d_model, tile_p)   native (untransposed) input block
    # w_ref: (patch_len, d_model)          PyTorch nn.Linear weight, resident
    # b_ref: (1, nvars*patch_len)          bias tiled across nvars (f32), resident
    # o_ref: (1, tile_p, nvars*patch_len)  permuted, lane-dense output slab
    _, nvars, d_model, tile_p = x_ref.shape
    patch_len = w_ref.shape[0]

    xb = x_ref[0]                                                   # [V, D, Tp]
    wb = jnp.broadcast_to(w_ref[...], (nvars, patch_len, d_model))  # [V, N, D]

    # y[v, n, p] = sum_d W[n, d] * x[v, d, p]   (== einsum('vnd,vdp->vnp'))
    # Standard batched matmul orientation; fuses x.transpose(2, 3).
    y = jax.lax.dot_general(
        wb, xb,
        dimension_numbers=(((2,), (1,)), ((0,), (0,))),
        preferred_element_type=jnp.float32)                         # [V, N, Tp] f32

    # Rearrange to the permuted output layout: [Tp, V*N]  (fuses permute(0,2,1,3)).
    y = y.reshape(nvars * patch_len, tile_p)                        # merge leading dims
    y = y.T + b_ref[...]                                            # [Tp, V*N] + bias
    o_ref[0] = y.astype(o_ref.dtype)


def _choose_patch_tile(num_patch, nvars, d_model, itemsize):
    """Pick tile over num_patch: full dim, or a multiple of 128 (input-block lane dim)."""
    budget = 2 * 1024 * 1024                      # ~2 MiB per x block (x2 for double-buffer)
    row_bytes = nvars * d_model * itemsize
    if row_bytes * num_patch <= budget or num_patch <= 128:
        return num_patch
    tp = max(128, (budget // row_bytes) // 128 * 128)
    # TODO(synk): extremely large nvars*d_model (e.g. hundreds of channels) may still
    # exceed the VMEM budget at tp=128; that regime needs an nvars-split variant.
    return min(tp, num_patch)


def pretrain_head_forward(x, weight, bias, dropout_p=0.0):
    """
    x:      [bs, nvars, d_model, num_patch]
    weight: [patch_len, d_model]   (PyTorch nn.Linear layout)
    bias:   [patch_len]
    returns [bs, num_patch, nvars, patch_len]
    """
    # Dropout is identity in eval mode.
    # TODO(synk): training-mode dropout (pltpu.prng_random_bits mask) not implemented.
    del dropout_p

    bs, nvars, d_model, num_patch = x.shape
    patch_len = weight.shape[0]
    vn = nvars * patch_len
    itemsize = jnp.dtype(x.dtype).itemsize

    tile_p = _choose_patch_tile(num_patch, nvars, d_model, itemsize)
    grid = (bs, pl.cdiv(num_patch, tile_p))

    # Bias tiled across nvars so it can be added as a single lane-dense row (f32).
    b_tiled = jnp.tile(bias.astype(jnp.float32), nvars).reshape(1, vn)

    out_elems = bs * num_patch * vn
    cost = pl.CostEstimate(
        flops=2 * bs * nvars * num_patch * d_model * patch_len,
        transcendentals=0,
        bytes_accessed=itemsize * (int(x.size) + out_elems)
        + int(weight.size) * jnp.dtype(weight.dtype).itemsize
        + vn * 4,
    )

    out3 = pl.pallas_call(
        _pretrain_head_kernel,
        out_shape=jax.ShapeDtypeStruct((bs, num_patch, vn), x.dtype),
        grid_spec=pltpu.PrefetchScalarGridSpec(
            num_scalar_prefetch=0,
            grid=grid,
            in_specs=[
                # x streams in native layout, one (batch, patch-tile) block per step.
                pl.BlockSpec((1, nvars, d_model, tile_p), lambda b, p: (b, 0, 0, p)),
                # Weight and bias: constant index_map -> fetched once, kept resident.
                pl.BlockSpec((patch_len, d_model), lambda b, p: (0, 0)),
                pl.BlockSpec((1, vn), lambda b, p: (0, 0)),
            ],
            out_specs=pl.BlockSpec((1, tile_p, vn), lambda b, p: (b, p, 0)),
        ),
        compiler_params=pltpu.CompilerParams(
            dimension_semantics=("parallel", "parallel"),
            vmem_limit_bytes=32 * 1024 * 1024,
        ),
        cost_estimate=cost,
    )(x, weight, b_tiled)

    # Free metadata reshape: [bs, num_patch, nvars*patch_len] -> [bs, num_patch, nvars, patch_len]
    return out3.reshape(bs, num_patch, nvars, patch_len)


def _reference(x, weight, bias):
    # pure-JAX reference for verification
    xt = jnp.transpose(x, (0, 1, 3, 2))
    y = jnp.einsum("bvpd,nd->bvpn", xt, weight) + bias
    return jnp.transpose(y, (0, 2, 1, 3))


if __name__ == "__main__":
    # Small shapes consistent with the module.
    bs, nvars, d_model, num_patch, patch_len = 2, 4, 32, 8, 16

    key = jax.random.PRNGKey(0)
    kx, kw, kb = jax.random.split(key, 3)

    x = jax.random.normal(kx, (bs, nvars, d_model, num_patch), dtype=jnp.float32)

    # Deterministic parameter init (PyTorch-Linear-like uniform).
    bound = 1.0 / (d_model ** 0.5)
    weight = jax.random.uniform(kw, (patch_len, d_model), jnp.float32, -bound, bound)
    bias = jax.random.uniform(kb, (patch_len,), jnp.float32, -bound, bound)

    out = pretrain_head_forward(x, weight, bias, dropout_p=0.1)
    out = jax.block_until_ready(out)

    ref = _reference(x, weight, bias)
    assert out.shape == (bs, num_patch, nvars, patch_len), out.shape
    assert jnp.allclose(out, ref, atol=1e-5, rtol=1e-5), "mismatch vs reference"

    print("KERNEL_OK")
</pallas_src>

<mosaic_0001>
module attributes {stable_mosaic.version = 11 : i64} {
  func.func @_pretrain_head_kernel(%arg0: i32, %arg1: i32, %arg2: memref<1x4x32x8xf32, #tpu.memory_space<vmem>>, %arg3: memref<16x32xf32, #tpu.memory_space<vmem>>, %arg4: memref<1x64xf32, #tpu.memory_space<vmem>>, %arg5: memref<1x8x64xf32, #tpu.memory_space<vmem>>) attributes {dimension_semantics = [#tpu.dimension_semantics<parallel>, #tpu.dimension_semantics<parallel>], iteration_bounds = array<i64: 2, 1>, scalar_prefetch = 0 : i64, scratch_operands = 0 : i64, tpu.core_type = #tpu.core_type<tc>, window_params = [{transform_indices = @transform_0, window_bounds = array<i64: 1, 4, 32, 8>}, {pipeline_mode = #tpu.pipeline_mode<synchronous>, transform_indices = @transform_1, window_bounds = array<i64: 16, 32>}, {pipeline_mode = #tpu.pipeline_mode<synchronous>, transform_indices = @transform_2, window_bounds = array<i64: 1, 64>}, {transform_indices = @transform_3, window_bounds = array<i64: 1, 8, 64>}]} {
    %c0 = arith.constant 0 : index
    %c0_0 = arith.constant 0 : index
    %c0_1 = arith.constant 0 : index
    %c0_2 = arith.constant 0 : index
    %0 = vector.load %arg2[%c0, %c0_0, %c0_1, %c0_2] : memref<1x4x32x8xf32, #tpu.memory_space<vmem>>, vector<1x4x32x8xf32>
    %1 = vector.shape_cast %0 : vector<1x4x32x8xf32> to vector<4x32x8xf32>
    %c0_3 = arith.constant 0 : index
    %c0_4 = arith.constant 0 : index
    %2 = vector.load %arg3[%c0_3, %c0_4] : memref<16x32xf32, #tpu.memory_space<vmem>>, vector<16x32xf32>
    %3 = vector.shape_cast %2 : vector<16x32xf32> to vector<1x16x32xf32>
    %4 = vector.broadcast %3 : vector<1x16x32xf32> to vector<4x16x32xf32>
    %cst = arith.constant dense<0.000000e+00> : vector<4x16x8xf32>
    %5 = tpu.matmul %4, %1, %cst {dimension_numbers = #tpu.dot_dimension_numbers<[2], [1], [1], [2], [0, 0, 0, 1, 1, 2], [0], [0]>} : vector<4x16x32xf32>, vector<4x32x8xf32>, vector<4x16x8xf32> -> vector<4x16x8xf32>
    %6 = vector.shape_cast %5 : vector<4x16x8xf32> to vector<64x8xf32>
    %7 = tpu.transpose %6, [1, 0] : vector<64x8xf32> -> vector<8x64xf32>
    %c0_5 = arith.constant 0 : index
    %c0_6 = arith.constant 0 : index
    %8 = vector.load %arg4[%c0_5, %c0_6] : memref<1x64xf32, #tpu.memory_space<vmem>>, vector<1x64xf32>
    %9 = vector.broadcast %8 : vector<1x64xf32> to vector<8x64xf32>
    %10 = arith.addf %7, %9 : vector<8x64xf32>
    %c0_7 = arith.constant 0 : index
    %c0_8 = arith.constant 0 : index
    %c0_9 = arith.constant 0 : index
    %11 = vector.load %arg5[%c0_7, %c0_8, %c0_9] : memref<1x8x64xf32, #tpu.memory_space<vmem>>, vector<1x8x64xf32>
    %12 = vector.shape_cast %11 : vector<1x8x64xf32> to vector<8x64xf32>
    %13 = vector.shape_cast %10 : vector<8x64xf32> to vector<1x8x64xf32>
    tpu.vector_store %arg5[%c0_7, %c0_8, %c0_9], %13 {strides = array<i32>} : memref<1x8x64xf32, #tpu.memory_space<vmem>>, vector<1x8x64xf32>,
    return
  }
  func.func @transform_0(%arg0: i32, %arg1: i32) -> (i32, i32, i32, i32) {
    %c0_i32 = arith.constant 0 : i32
    %c0_i32_0 = arith.constant 0 : i32
    %c0_i32_1 = arith.constant 0 : i32
    return %arg0, %c0_i32, %c0_i32_0, %arg1 : i32, i32, i32, i32
  }
  func.func @transform_1(%arg0: i32, %arg1: i32) -> (i32, i32) {
    %c0_i32 = arith.constant 0 : i32
    %c0_i32_0 = arith.constant 0 : i32
    %c0_i32_1 = arith.constant 0 : i32
    return %c0_i32, %c0_i32_0 : i32, i32
  }
  func.func @transform_2(%arg0: i32, %arg1: i32) -> (i32, i32) {
    %c0_i32 = arith.constant 0 : i32
    %c0_i32_0 = arith.constant 0 : i32
    %c0_i32_1 = arith.constant 0 : i32
    return %c0_i32, %c0_i32_0 : i32, i32
  }
  func.func @transform_3(%arg0: i32, %arg1: i32) -> (i32, i32, i32) {
    %c0_i32 = arith.constant 0 : i32
    %c0_i32_0 = arith.constant 0 : i32
    return %arg0, %arg1, %c0_i32 : i32, i32, i32
  }
}

</mosaic_0001>

<llo_original>
// kernel: tpu_custom_call.1
$region0: #{tpu_custom_call.1}
  #allocation0 [shape = 'u32[]', space=smem, size = 0x4, offset = 0x4, fixed_abs, tag = 'smem constant byte address 0x4 - core index']
  #allocation1 [shape = 'u32[144,128]{1,0:T(1,128)}', space=vmem, size = 0x12000, scoped, tag = 'internal scratch']
  %s0 = inlined_call_operand.vmem [shape: f32[2,4,32,8], index: 0, kind: input, shape index: {}]
  %s1 = inlined_call_operand.vmem [shape: f32[16,32], index: 1, kind: input, shape index: {}]
  %s2 = inlined_call_operand.vmem [shape: f32[1,64], index: 2, kind: input, shape index: {}]
  %s3 = inlined_call_operand.hbm [shape: f32[2,8,64], index: 3, kind: output, shape index: {}]
  %s4 = sld [smem:[#allocation0]]
  $region45: #{tpu_custom_call.1} parent=0
    _
  %s6 = ssub.s32 1, %s4
  %s7 = scalar_select 0, %s6, %s4
  $region1: #{tpu_custom_call.1} parent=0
    #allocation2 [shape = 'u8[8192]{0}', space=vmem, size = 0x2000, scoped, tag = 'output window, operand 0']
    #allocation3 [shape = 's32[2]{0}', space=sflag, size = 0x8, scoped, tag = 'scoped memory for tpu_custom_call.1']
    %8 = vsyncpa [#allocation3], 0
    %s9 = scalar_lea.sflag [#allocation3], 1
    %10 = vsyncpa %s9, 0
    loop: start=0, step=1, limit=4
    $region2: #{tpu_custom_call.1} parent=1 // loop_pre_header
      _
    $region3: #{tpu_custom_call.1} parent=1 // loop_header
      %s12 = sphi 0, %s16
      %p13 = scmp.ge.s32.totalorder %s12, 4
      %s19 = sphi 0, %s31
      %s20 = sphi 0, %s27
      %s21 = sphi 0, %s19
      %s22 = sphi 0, %s20
      %s23 = sphi 0, %s21
      %s24 = sphi 0, %s22
      %s36 = sphi 0, %s38
      %s39 = sphi 0, %s36
      %s40 = sphi 0, %s39
      %s56 = sphi 0, %s40
      %s60 = sphi 0, %s60
      %s62 = sphi 0, %s60
      %s63 = sphi 0, %s62
      %s77 = sphi 0, %s63
      %s81 = sphi 0, %s81
      %s83 = sphi 0, %s81
      %s84 = sphi 0, %s83
      %s98 = sphi 0, %s84
      %s106 = sphi 0, %s108
      %s109 = sphi 0, %s106
      %s110 = sphi 0, %s109
      %s126 = sphi 0, %s110
    $region4: #{tpu_custom_call.1} parent=1 // loop_header_branch
      %15 = sbr.rel (%p13) target = $region8
    $region5: #{tpu_custom_call.1} parent=1 // loop_body
      %s17 = ssub.s32 %s12, 1
      %s18 = ssub.s32 %s12, 2
      %s25 = sadd.s32 1, %s20
      %p26 = scmp.ge.s32.totalorder %s25, 1
      %s27 = scalar_select %p26, 0, %s25
      %s28 = sadd.s32 1, %s19
      %s29 = scalar_select %p26, %s28, %s19
      %p30 = scmp.ge.s32.totalorder %s29, 2
      %s31 = scalar_select %p30, 0, %s29
      %s32 = ssub.s32 %s19, %s31
      %s33 = ssub.s32 %s20, %s27
      %s34 = sor.u32 %s32, %s33
      %p35 = scmp.eq.s32.totalorder %s34, 0
      %s37 = sadd.s32 %s36, 1
      %s38 = scalar_select %p35, %s36, %s37
      %p41 = pneg %p35
      %p42 = scmp.eq.s32.totalorder %s12, 1
      %p43 = por %p41, %p42
      %p44 = scmp.ne.s32.totalorder %s36, %s39
      %p45 = scmp.eq.s32.totalorder %s12, 0
      %p46 = por %p44, %p45
      %p47 = scmp.ne.s32.totalorder %s36, %s39
      %p48 = scmp.eq.s32.totalorder %s17, 1
      %p49 = por %p47, %p48
      %p50 = scmp.ne.s32.totalorder %s39, %s40
      %p51 = scmp.eq.s32.totalorder %s17, 0
      %p52 = por %p50, %p51
      %p53 = scmp.ne.s32.totalorder %s39, %s40
      %p54 = scmp.eq.s32.totalorder %s18, 1
      %p55 = por %p53, %p54
      %p57 = scmp.ne.s32.totalorder %s40, %s56
      %p58 = scmp.eq.s32.totalorder %s18, 0
      %p59 = por %p57, %p58
      %s61 = sadd.s32 %s60, 1
      %p64 = scmp.eq.s32.totalorder %s12, 1
      %p65 = scmp.ne.s32.totalorder %s60, %s62
      %p66 = scmp.eq.s32.totalorder %s12, 0
      %p67 = por %p65, %p66
      %p68 = scmp.ne.s32.totalorder %s60, %s62
      %p69 = scmp.eq.s32.totalorder %s17, 1
      %p70 = por %p68, %p69
      %p71 = scmp.ne.s32.totalorder %s62, %s63
      %p72 = scmp.eq.s32.totalorder %s17, 0
      %p73 = por %p71, %p72
      %p74 = scmp.ne.s32.totalorder %s62, %s63
      %p75 = scmp.eq.s32.totalorder %s18, 1
      %p76 = por %p74, %p75
      %p78 = scmp.ne.s32.totalorder %s63, %s77
      %p79 = scmp.eq.s32.totalorder %s18, 0
      %p80 = por %p78, %p79
      %s82 = sadd.s32 %s81, 1
      %p85 = scmp.eq.s32.totalorder %s12, 1
      %p86 = scmp.ne.s32.totalorder %s81, %s83
      %p87 = scmp.eq.s32.totalorder %s12, 0
      %p88 = por %p86, %p87
      %p89 = scmp.ne.s32.totalorder %s81, %s83
      %p90 = scmp.eq.s32.totalorder %s17, 1
      %p91 = por %p89, %p90
      %p92 = scmp.ne.s32.totalorder %s83, %s84
      %p93 = scmp.eq.s32.totalorder %s17, 0
      %p94 = por %p92, %p93
      %p95 = scmp.ne.s32.totalorder %s83, %s84
      %p96 = scmp.eq.s32.totalorder %s18, 1
      %p97 = por %p95, %p96
      %p99 = scmp.ne.s32.totalorder %s84, %s98
      %p100 = scmp.eq.s32.totalorder %s18, 0
      %p101 = por %p99, %p100
      %s102 = ssub.s32 %s19, %s31
      %s103 = ssub.s32 %s20, %s27
      %s104 = sor.u32 %s102, %s103
      %p105 = scmp.eq.s32.totalorder %s104, 0
      %s107 = sadd.s32 %s106, 1
      %s108 = scalar_select %p105, %s106, %s107
      %p111 = pneg %p105
      %p112 = scmp.eq.s32.totalorder %s12, 1
      %p113 = por %p111, %p112
      %p114 = scmp.ne.s32.totalorder %s106, %s109
      %p115 = scmp.eq.s32.totalorder %s12, 0
      %p116 = por %p114, %p115
      %p117 = scmp.ne.s32.totalorder %s106, %s109
      %p118 = scmp.eq.s32.totalorder %s17, 1
      %p119 = por %p117, %p118
      %p120 = scmp.ne.s32.totalorder %s109, %s110
      %p121 = scmp.eq.s32.totalorder %s17, 0
      %p122 = por %p120, %p121
      %p123 = scmp.ne.s32.totalorder %s109, %s110
      %p124 = scmp.eq.s32.totalorder %s18, 1
      %p125 = por %p123, %p124
      %p127 = scmp.ne.s32.totalorder %s110, %s126
      %p128 = scmp.eq.s32.totalorder %s18, 0
      %p129 = por %p127, %p128
      %p130 = scmp.le.s32.totalorder 1, %s12
      %p131 = scmp.lt.s32.totalorder %s12, 3
      %p132 = pnand %p130, %p131
      %p133 = pneg %p132
      // Predicated region
      $region9: #{tpu_custom_call.1} parent=5 // pred_check
        _
      $region10: #{tpu_custom_call.1} parent=5 // pred_check_branch
        %135 = sbr.rel (%p132) target = $region12
      $region11: #{tpu_custom_call.1} parent=5 // pred_region
        %s136 = ssub.s32 %s12, 1
        // Predicated region
        $region13: #{tpu_custom_call.1} parent=11 // pred_check
          %p137 = pneg %p73
        $region14: #{tpu_custom_call.1} parent=11 // pred_check_branch
          %139 = sbr.rel (%p137) target = $region16
        $region15: #{tpu_custom_call.1} parent=11 // pred_region
          _
        $region16: #{tpu_custom_call.1} parent=11 // pred_fallthru
          _
        // Predicated region
        $region17: #{tpu_custom_call.1} parent=11 // pred_check
          %p140 = pneg %p94
        $region18: #{tpu_custom_call.1} parent=11 // pred_check_branch
          %142 = sbr.rel (%p140) target = $region20
        $region19: #{tpu_custom_call.1} parent=11 // pred_region
          _
        $region20: #{tpu_custom_call.1} parent=11 // pred_fallthru
          _
      $region12: #{tpu_custom_call.1} parent=5 // pred_fallthru
        _
      %p143 = scmp.lt.s32.totalorder %s12, 2
      // Predicated region
      $region21: #{tpu_custom_call.1} parent=5 // pred_check
        %p144 = pneg %p143
      $region22: #{tpu_custom_call.1} parent=5 // pred_check_branch
        %146 = sbr.rel (%p144) target = $region24
      $region23: #{tpu_custom_call.1} parent=5 // pred_region
        // Predicated region
        $region25: #{tpu_custom_call.1} parent=23 // pred_check
          %p147 = pneg %p46
        $region26: #{tpu_custom_call.1} parent=23 // pred_check_branch
          %149 = sbr.rel (%p147) target = $region28
        $region27: #{tpu_custom_call.1} parent=23 // pred_region
          %p150 = scmp.lt.s32.totalorder %s19, 1
          %s151 = scalar_select %p150, %s19, 1
          %p152 = scmp.lt.s32.totalorder %s20, 0
          %s153 = scalar_select %p152, %s20, 0
          %s154 = smul.addr %s151, 16
          %s155 = sadd.s32 %s153, %s154
          %s156 = smul.addr %s155, 8
          %s157 = scalar_lea.vmem %s0, %s156
        $region28: #{tpu_custom_call.1} parent=23 // pred_fallthru
          _
      $region24: #{tpu_custom_call.1} parent=5 // pred_fallthru
        _
      %p158 = scmp.le.s32.totalorder 1, %s12
      %p159 = scmp.lt.s32.totalorder %s12, 3
      %p160 = pnand %p158, %p159
      %p161 = pneg %p160
      // Predicated region
      $region29: #{tpu_custom_call.1} parent=5 // pred_check
        _
      $region30: #{tpu_custom_call.1} parent=5 // pred_check_branch
        %163 = sbr.rel (%p160) target = $region32
      $region31: #{tpu_custom_call.1} parent=5 // pred_region
        %s164 = ssub.s32 %s12, 1
        %p165 = scmp.lt.s32.totalorder %s21, 1
        %s166 = scalar_select %p165, %s21, 1
        %p167 = scmp.lt.s32.totalorder %s22, 0
        %s168 = scalar_select %p167, %s22, 0
        %s169 = smul.addr %s166, 16
        %s170 = sadd.s32 %s168, %s169
        %s171 = smul.addr %s170, 8
        %s172 = scalar_lea.vmem %s0, %s171
        %p173 = pneg %p52
        %p174 = pneg %p49
        %p175 = pneg %p73
        %p176 = pneg %p70
        %p177 = pneg %p94
        %p178 = pneg %p91
        %p179 = pneg %p122
        %p180 = pneg %p119
        %s181 = sand.u32 %s109, 1
        %s182 = scalar_lea.sflag [#allocation3], %s181
        %s183 = sand.u32 %s109, 1
        %s184 = smul.addr %s183, 8
        %s185 = scalar_lea.vmem [#allocation2], %s184
        %p186 = scmp.lt.s32.totalorder %s21, 1
        %s187 = scalar_select %p186, %s21, 1
        %p188 = scmp.lt.s32.totalorder %s22, 0
        %s189 = scalar_select %p188, %s22, 0
        %s190 = smul.addr %s187, 16
        %s191 = sadd.s32 %s189, %s190
        %s192 = smul.addr %s191, 8
        %s193 = scalar_lea.vmem %s0, %s192
        %v194 = vld [vmem:[%s193] sm:$0xff]
        %v195 = vld [vmem:[%s193 + $0x8] sm:$0xff]
        %v196 = vld [vmem:[%s193 + $0x10] sm:$0xff]
        %v197 = vld [vmem:[%s193 + $0x18] sm:$0xff]
        %v198 = vld [vmem:[%s193 + $0x20] sm:$0xff]
        %v199 = vld [vmem:[%s193 + $0x28] sm:$0xff]
        %v200 = vld [vmem:[%s193 + $0x30] sm:$0xff]
        %v201 = vld [vmem:[%s193 + $0x38] sm:$0xff]
        %v202 = vld [vmem:[%s193 + $0x40] sm:$0xff]
        %v203 = vld [vmem:[%s193 + $0x48] sm:$0xff]
        %v204 = vld [vmem:[%s193 + $0x50] sm:$0xff]
        %v205 = vld [vmem:[%s193 + $0x58] sm:$0xff]
        %v206 = vld [vmem:[%s193 + $0x60] sm:$0xff]
        %v207 = vld [vmem:[%s193 + $0x68] sm:$0xff]
        %v208 = vld [vmem:[%s193 + $0x70] sm:$0xff]
        %v209 = vld [vmem:[%s193 + $0x78] sm:$0xff]
        %v210 = vld [vmem:[%s1] sm:$0xff]
        %v211 = vld [vmem:[%s1 + $0x8] sm:$0xff]
        %vm212 = vcmask 261120
        %v214 = vsel %vm212, %v210, 0
        %v217 = vsel %vm212, %v211, 0
        %219 = vmatprep.subr.mxu0 0.0
        %220 = vmatpush1.msra.mxu0 %v194
        %221 = vmatprep.subr.mxu0 0.0
        %222 = vmatpush1.msra.mxu0 %v195
        %223 = vmatprep.subr.mxu0 0.0
        %224 = vmatpush1.msra.mxu0 %v196
        %225 = vmatprep.subr.mxu0 0.0
        %226 = vmatpush1.msra.mxu0 %v197
        %227 = vmatprep.subr.mxu0 0.0
        %228 = vmatpush1.msra.mxu0 0.0
        %229 = vmatprep.subr.mxu0 0.0
        %230 = vmatpush1.msra.mxu0 0.0
        %231 = vmatprep.subr.mxu0 0.0
        %232 = vmatpush1.msra.mxu0 0.0
        %233 = vmatprep.subr.mxu0 0.0
        %234 = vmatpush1.msra.mxu0 0.0
        %235 = vmatprep.subr.mxu0 0.0
        %236 = vmatpush1.msra.mxu0 0.0
        %237 = vmatprep.subr.mxu0 0.0
        %238 = vmatpush1.msra.mxu0 0.0
        %239 = vmatprep.subr.mxu0 0.0
        %240 = vmatpush1.msra.mxu0 0.0
        %241 = vmatprep.subr.mxu0 0.0
        %242 = vmatpush1.msra.mxu0 0.0
        %243 = vmatprep.subr.mxu0 0.0
        %244 = vmatpush1.msra.mxu0 0.0
        %245 = vmatprep.subr.mxu0 0.0
        %246 = vmatpush1.msra.mxu0 0.0
        %247 = vmatprep.subr.mxu0 0.0
        %248 = vmatpush1.msra.mxu0 0.0
        %249 = vmatprep.subr.mxu0 0.0
        %250 = vmatpush1.msra.mxu0 0.0
        %251 = vmatprep.subr.mxu0 0.0
        %252 = vmatpush1.msra.mxu0 0.0
        %253 = vmatprep.subr.mxu0 0.0
        %254 = vmatpush1.msra.mxu0 0.0
        %255 = vmatprep.subr.mxu0 0.0
        %256 = vmatpush1.msra.mxu0 0.0
        %257 = vmatprep.subr.mxu0 0.0
        %258 = vmatpush1.msra.mxu0 0.0
        %259 = vmatprep.subr.mxu0 0.0
        %260 = vmatpush1.msra.mxu0 0.0
        %261 = vmatprep.subr.mxu0 0.0
        %262 = vmatpush1.msra.mxu0 0.0
        %263 = vmatprep.subr.mxu0 0.0
        %264 = vmatpush1.msra.mxu0 0.0
        %265 = vmatprep.subr.mxu0 0.0
        %266 = vmatpush1.msra.mxu0 0.0
        %267 = vmatprep.subr.mxu0 0.0
        %268 = vmatpush1.msra.mxu0 0.0
        %269 = vmatprep.subr.mxu0 0.0
        %270 = vmatpush1.msra.mxu0 0.0
        %271 = vmatprep.subr.mxu0 0.0
        %272 = vmatpush1.msra.mxu0 0.0
        %273 = vmatprep.subr.mxu0 0.0
        %274 = vmatpush1.msra.mxu0 0.0
        %275 = vmatprep.subr.mxu0 0.0
        %276 = vmatpush1.msra.mxu0 0.0
        %277 = vmatprep.subr.mxu0 0.0
        %278 = vmatpush1.msra.mxu0 0.0
        %279 = vmatprep.subr.mxu0 0.0
        %280 = vmatpush1.msra.mxu0 0.0
        %281 = vmatprep.subr.mxu0 0.0
        %282 = vmatpush1.msra.mxu0 0.0
        %283 = vmatprep.mubr.f32.mxu0 0.0
        %284 = vmatmul.mubr.f32.gmra.mrb[0].mxu0 %v214
        %v285 = vpop.f32.mrb[0].mxu0
        %v286 = vadd.f32 0.0, %v285
        %v287 = vpop.f32.mrb[0].mxu0
        %288 = vmatprep.mubr.f32.mxu0 0.0
        %289 = vmatmul.mubr.f32.gmra.mrb[0].mxu0 %v217
        %v290 = vpop.f32.mrb[0].mxu0
        %v291 = vadd.f32 0.0, %v290
        %v292 = vpop.f32.mrb[0].mxu0
        %293 = vdwg.mxu0
        %294 = vmatprep.subr.mxu0 0.0
        %295 = vmatpush1.msra.mxu0 %v198
        %296 = vmatprep.subr.mxu0 0.0
        %297 = vmatpush1.msra.mxu0 %v199
        %298 = vmatprep.subr.mxu0 0.0
        %299 = vmatpush1.msra.mxu0 %v200
        %300 = vmatprep.subr.mxu0 0.0
        %301 = vmatpush1.msra.mxu0 %v201
        %302 = vmatprep.subr.mxu0 0.0
        %303 = vmatpush1.msra.mxu0 0.0
        %304 = vmatprep.subr.mxu0 0.0
        %305 = vmatpush1.msra.mxu0 0.0
        %306 = vmatprep.subr.mxu0 0.0
        %307 = vmatpush1.msra.mxu0 0.0
        %308 = vmatprep.subr.mxu0 0.0
        %309 = vmatpush1.msra.mxu0 0.0
        %310 = vmatprep.subr.mxu0 0.0
        %311 = vmatpush1.msra.mxu0 0.0
        %312 = vmatprep.subr.mxu0 0.0
        %313 = vmatpush1.msra.mxu0 0.0
        %314 = vmatprep.subr.mxu0 0.0
        %315 = vmatpush1.msra.mxu0 0.0
        %316 = vmatprep.subr.mxu0 0.0
        %317 = vmatpush1.msra.mxu0 0.0
        %318 = vmatprep.subr.mxu0 0.0
        %319 = vmatpush1.msra.mxu0 0.0
        %320 = vmatprep.subr.mxu0 0.0
        %321 = vmatpush1.msra.mxu0 0.0
        %322 = vmatprep.subr.mxu0 0.0
        %323 = vmatpush1.msra.mxu0 0.0
        %324 = vmatprep.subr.mxu0 0.0
        %325 = vmatpush1.msra.mxu0 0.0
        %326 = vmatprep.subr.mxu0 0.0
        %327 = vmatpush1.msra.mxu0 0.0
        %328 = vmatprep.subr.mxu0 0.0
        %329 = vmatpush1.msra.mxu0 0.0
        %330 = vmatprep.subr.mxu0 0.0
        %331 = vmatpush1.msra.mxu0 0.0
        %332 = vmatprep.subr.mxu0 0.0
        %333 = vmatpush1.msra.mxu0 0.0
        %334 = vmatprep.subr.mxu0 0.0
        %335 = vmatpush1.msra.mxu0 0.0
        %336 = vmatprep.subr.mxu0 0.0
        %337 = vmatpush1.msra.mxu0 0.0
        %338 = vmatprep.subr.mxu0 0.0
        %339 = vmatpush1.msra.mxu0 0.0
        %340 = vmatprep.subr.mxu0 0.0
        %341 = vmatpush1.msra.mxu0 0.0
        %342 = vmatprep.subr.mxu0 0.0
        %343 = vmatpush1.msra.mxu0 0.0
        %344 = vmatprep.subr.mxu0 0.0
        %345 = vmatpush1.msra.mxu0 0.0
        %346 = vmatprep.subr.mxu0 0.0
        %347 = vmatpush1.msra.mxu0 0.0
        %348 = vmatprep.subr.mxu0 0.0
        %349 = vmatpush1.msra.mxu0 0.0
        %350 = vmatprep.subr.mxu0 0.0
        %351 = vmatpush1.msra.mxu0 0.0
        %352 = vmatprep.subr.mxu0 0.0
        %353 = vmatpush1.msra.mxu0 0.0
        %354 = vmatprep.subr.mxu0 0.0
        %355 = vmatpush1.msra.mxu0 0.0
        %356 = vmatprep.subr.mxu0 0.0
        %357 = vmatpush1.msra.mxu0 0.0
        %358 = vmatprep.mubr.f32.mxu0 0.0
        %359 = vmatmul.mubr.f32.gmra.mrb[0].mxu0 %v214
        %v360 = vpop.f32.mrb[0].mxu0
        %v361 = vadd.f32 0.0, %v360
        %v362 = vpop.f32.mrb[0].mxu0
        %363 = vmatprep.mubr.f32.mxu0 0.0
        %364 = vmatmul.mubr.f32.gmra.mrb[0].mxu0 %v217
        %v365 = vpop.f32.mrb[0].mxu0
        %v366 = vadd.f32 0.0, %v365
        %v367 = vpop.f32.mrb[0].mxu0
        %368 = vdwg.mxu0
        %369 = vmatprep.subr.mxu0 0.0
        %370 = vmatpush1.msra.mxu0 %v202
        %371 = vmatprep.subr.mxu0 0.0
        %372 = vmatpush1.msra.mxu0 %v203
        %373 = vmatprep.subr.mxu0 0.0
        %374 = vmatpush1.msra.mxu0 %v204
        %375 = vmatprep.subr.mxu0 0.0
        %376 = vmatpush1.msra.mxu0 %v205
        %377 = vmatprep.subr.mxu0 0.0
        %378 = vmatpush1.msra.mxu0 0.0
        %379 = vmatprep.subr.mxu0 0.0
        %380 = vmatpush1.msra.mxu0 0.0
        %381 = vmatprep.subr.mxu0 0.0
        %382 = vmatpush1.msra.mxu0 0.0
        %383 = vmatprep.subr.mxu0 0.0
        %384 = vmatpush1.msra.mxu0 0.0
        %385 = vmatprep.subr.mxu0 0.0
        %386 = vmatpush1.msra.mxu0 0.0
        %387 = vmatprep.subr.mxu0 0.0
        %388 = vmatpush1.msra.mxu0 0.0
        %389 = vmatprep.subr.mxu0 0.0
        %390 = vmatpush1.msra.mxu0 0.0
        %391 = vmatprep.subr.mxu0 0.0
        %392 = vmatpush1.msra.mxu0 0.0
        %393 = vmatprep.subr.mxu0 0.0
        %394 = vmatpush1.msra.mxu0 0.0
        %395 = vmatprep.subr.mxu0 0.0
        %396 = vmatpush1.msra.mxu0 0.0
        %397 = vmatprep.subr.mxu0 0.0
        %398 = vmatpush1.msra.mxu0 0.0
        %399 = vmatprep.subr.mxu0 0.0
        %400 = vmatpush1.msra.mxu0 0.0
        %401 = vmatprep.subr.mxu0 0.0
        %402 = vmatpush1.msra.mxu0 0.0
        %403 = vmatprep.subr.mxu0 0.0
        %404 = vmatpush1.msra.mxu0 0.0
        %405 = vmatprep.subr.mxu0 0.0
        %406 = vmatpush1.msra.mxu0 0.0
        %407 = vmatprep.subr.mxu0 0.0
        %408 = vmatpush1.msra.mxu0 0.0
        %409 = vmatprep.subr.mxu0 0.0
        %410 = vmatpush1.msra.mxu0 0.0
        %411 = vmatprep.subr.mxu0 0.0
        %412 = vmatpush1.msra.mxu0 0.0
        %413 = vmatprep.subr.mxu0 0.0
        %414 = vmatpush1.msra.mxu0 0.0
        %415 = vmatprep.subr.mxu0 0.0
        %416 = vmatpush1.msra.mxu0 0.0
        %417 = vmatprep.subr.mxu0 0.0
        %418 = vmatpush1.msra.mxu0 0.0
        %419 = vmatprep.subr.mxu0 0.0
        %420 = vmatpush1.msra.mxu0 0.0
        %421 = vmatprep.subr.mxu0 0.0
        %422 = vmatpush1.msra.mxu0 0.0
        %423 = vmatprep.subr.mxu0 0.0
        %424 = vmatpush1.msra.mxu0 0.0
        %425 = vmatprep.subr.mxu0 0.0
        %426 = vmatpush1.msra.mxu0 0.0
        %427 = vmatprep.subr.mxu0 0.0
        %428 = vmatpush1.msra.mxu0 0.0
        %429 = vmatprep.subr.mxu0 0.0
        %430 = vmatpush1.msra.mxu0 0.0
        %431 = vmatprep.subr.mxu0 0.0
        %432 = vmatpush1.msra.mxu0 0.0
        %433 = vmatprep.mubr.f32.mxu0 0.0
        %434 = vmatmul.mubr.f32.gmra.mrb[0].mxu0 %v214
        %v435 = vpop.f32.mrb[0].mxu0
        %v436 = vadd.f32 0.0, %v435
        %v437 = vpop.f32.mrb[0].mxu0
        %438 = vmatprep.mubr.f32.mxu0 0.0
        %439 = vmatmul.mubr.f32.gmra.mrb[0].mxu0 %v217
        %v440 = vpop.f32.mrb[0].mxu0
        %v441 = vadd.f32 0.0, %v440
        %v442 = vpop.f32.mrb[0].mxu0
        %443 = vdwg.mxu0
        %444 = vmatprep.subr.mxu0 0.0
        %445 = vmatpush1.msra.mxu0 %v206
        %446 = vmatprep.subr.mxu0 0.0
        %447 = vmatpush1.msra.mxu0 %v207
        %448 = vmatprep.subr.mxu0 0.0
        %449 = vmatpush1.msra.mxu0 %v208
        %450 = vmatprep.subr.mxu0 0.0
        %451 = vmatpush1.msra.mxu0 %v209
        %452 = vmatprep.subr.mxu0 0.0
        %453 = vmatpush1.msra.mxu0 0.0
        %454 = vmatprep.subr.mxu0 0.0
        %455 = vmatpush1.msra.mxu0 0.0
        %456 = vmatprep.subr.mxu0 0.0
        %457 = vmatpush1.msra.mxu0 0.0
        %458 = vmatprep.subr.mxu0 0.0
        %459 = vmatpush1.msra.mxu0 0.0
        %460 = vmatprep.subr.mxu0 0.0
        %461 = vmatpush1.msra.mxu0 0.0
        %462 = vmatprep.subr.mxu0 0.0
        %463 = vmatpush1.msra.mxu0 0.0
        %464 = vmatprep.subr.mxu0 0.0
        %465 = vmatpush1.msra.mxu0 0.0
        %466 = vmatprep.subr.mxu0 0.0
        %467 = vmatpush1.msra.mxu0 0.0
        %468 = vmatprep.subr.mxu0 0.0
        %469 = vmatpush1.msra.mxu0 0.0
        %470 = vmatprep.subr.mxu0 0.0
        %471 = vmatpush1.msra.mxu0 0.0
        %472 = vmatprep.subr.mxu0 0.0
        %473 = vmatpush1.msra.mxu0 0.0
        %474 = vmatprep.subr.mxu0 0.0
        %475 = vmatpush1.msra.mxu0 0.0
        %476 = vmatprep.subr.mxu0 0.0
        %477 = vmatpush1.msra.mxu0 0.0
        %478 = vmatprep.subr.mxu0 0.0
        %479 = vmatpush1.msra.mxu0 0.0
        %480 = vmatprep.subr.mxu0 0.0
        %481 = vmatpush1.msra.mxu0 0.0
        %482 = vmatprep.subr.mxu0 0.0
        %483 = vmatpush1.msra.mxu0 0.0
        %484 = vmatprep.subr.mxu0 0.0
        %485 = vmatpush1.msra.mxu0 0.0
        %486 = vmatprep.subr.mxu0 0.0
        %487 = vmatpush1.msra.mxu0 0.0
        %488 = vmatprep.subr.mxu0 0.0
        %489 = vmatpush1.msra.mxu0 0.0
        %490 = vmatprep.subr.mxu0 0.0
        %491 = vmatpush1.msra.mxu0 0.0
        %492 = vmatprep.subr.mxu0 0.0
        %493 = vmatpush1.msra.mxu0 0.0
        %494 = vmatprep.subr.mxu0 0.0
        %495 = vmatpush1.msra.mxu0 0.0
        %496 = vmatprep.subr.mxu0 0.0
        %497 = vmatpush1.msra.mxu0 0.0
        %498 = vmatprep.subr.mxu0 0.0
        %499 = vmatpush1.msra.mxu0 0.0
        %500 = vmatprep.subr.mxu0 0.0
        %501 = vmatpush1.msra.mxu0 0.0
        %502 = vmatprep.subr.mxu0 0.0
        %503 = vmatpush1.msra.mxu0 0.0
        %504 = vmatprep.subr.mxu0 0.0
        %505 = vmatpush1.msra.mxu0 0.0
        %506 = vmatprep.subr.mxu0 0.0
        %507 = vmatpush1.msra.mxu0 0.0
        %508 = vmatprep.mubr.f32.mxu0 0.0
        %509 = vmatmul.mubr.f32.gmra.mrb[0].mxu0 %v214
        %v510 = vpop.f32.mrb[0].mxu0
        %v511 = vadd.f32 0.0, %v510
        %v512 = vpop.f32.mrb[0].mxu0
        %513 = vmatprep.mubr.f32.mxu0 0.0
        %514 = vmatmul.mubr.f32.gmra.mrb[0].mxu0 %v217
        %v515 = vpop.f32.mrb[0].mxu0
        %v516 = vadd.f32 0.0, %v515
        %v517 = vpop.f32.mrb[0].mxu0
        %518 = vdwg.mxu0
        %519 = vxpose.xlu0.b32.start [1/16] %v286, 128
        %520 = vxpose.xlu0.b32.cont [2/16] %v291, 128
        %521 = vxpose.xlu0.b32.cont [3/16] %v361, 128
        %522 = vxpose.xlu0.b32.cont [4/16] %v366, 128
        %523 = vxpose.xlu0.b32.cont [5/16] %v436, 128
        %524 = vxpose.xlu0.b32.cont [6/16] %v441, 128
        %525 = vxpose.xlu0.b32.cont [7/16] %v511, 128
        %526 = vxpose.xlu0.b32.cont [8/16] %v516, 128
        %527 = vxpose.xlu0.b32.cont [9/16] 0.0, 128
        %528 = vxpose.xlu0.b32.cont [10/16] 0.0, 128
        %529 = vxpose.xlu0.b32.cont [11/16] 0.0, 128
        %530 = vxpose.xlu0.b32.cont [12/16] 0.0, 128
        %531 = vxpose.xlu0.b32.cont [13/16] 0.0, 128
        %532 = vxpose.xlu0.b32.cont [14/16] 0.0, 128
        %533 = vxpose.xlu0.b32.cont [15/16] 0.0, 128
        %534 = vxpose.xlu0.b32.end [16/16] 0.0, 128
        %v535 = vpop.trf.xlu0
        %v536 = vpop.trf.xlu0
        %v537 = vpop.trf.xlu0
        %v538 = vpop.trf.xlu0
        %v539 = vpop.trf.xlu0
        %v540 = vpop.trf.xlu0
        %v541 = vpop.trf.xlu0
        %v542 = vpop.trf.xlu0
        %v543 = vpop.trf.xlu0
        %v544 = vpop.trf.xlu0
        %v545 = vpop.trf.xlu0
        %v546 = vpop.trf.xlu0
        %v547 = vpop.trf.xlu0
        %v548 = vpop.trf.xlu0
        %v549 = vpop.trf.xlu0
        %v550 = vpop.trf.xlu0
        %v551 = vld [vmem:[%s2] sm:$0x1]
        %v553 = vlaneseq
        %v554 = vshrl.u32 %v553, 7
        %v555 = vsub.s32 0, %v554
        %v556 = vrot.slane %v551, %v555
        %v558 = vadd.f32 %v535, %v556
        %vm559 = vcmask 523264
        %560 = vst.msk [vmem:[%s185] sm:$0xff] %vm559, %v558
        %s561 = sand.u32 %s109, 1
        %s562 = scalar_lea.sflag [#allocation3], %s561
        %s563 = sand.u32 %s109, 1
        %s564 = smul.addr %s563, 8
        %s565 = scalar_lea.vmem [#allocation2], %s564
        // Predicated region
        $region33: #{tpu_custom_call.1} parent=31 // pred_check
          %p566 = pneg %p119
        $region34: #{tpu_custom_call.1} parent=31 // pred_check_branch
          %568 = sbr.rel (%p566) target = $region36
        $region35: #{tpu_custom_call.1} parent=31 // pred_region
          %s570 = ssub.s32 128, 128
          %571 = vsyncadd %s562, %s570
          %s572 = sadd.s32 %s22, %s21
          %s573 = smul.addr %s572, 128
          %s574 = scalar_lea.hbm %s3, %s573
          %s576 = sshll.u32 %s565, 4
          %s577 = int_to_ptr.vmem [resolvable:$true] %s576
          %579 = dma.vmem_to_hbm [thread:$0]  %s577, 128, %s574, %s562
        $region36: #{tpu_custom_call.1} parent=31 // pred_fallthru
          _
      $region32: #{tpu_custom_call.1} parent=5 // pred_fallthru
        _
      %p580 = scmp.le.s32.totalorder 2, %s12
      // Predicated region
      $region37: #{tpu_custom_call.1} parent=5 // pred_check
        %p581 = pneg %p580
      $region38: #{tpu_custom_call.1} parent=5 // pred_check_branch
        %583 = sbr.rel (%p581) target = $region40
      $region39: #{tpu_custom_call.1} parent=5 // pred_region
        %s584 = ssub.s32 %s12, 2
        // Predicated region
        $region41: #{tpu_custom_call.1} parent=39 // pred_check
          %p585 = pneg %p125
        $region42: #{tpu_custom_call.1} parent=39 // pred_check_branch
          %587 = sbr.rel (%p585) target = $region44
        $region43: #{tpu_custom_call.1} parent=39 // pred_region
          %s588 = sand.u32 %s110, 1
          %s589 = scalar_lea.sflag [#allocation3], %s588
          %s590 = sand.u32 %s110, 1
          %s591 = smul.addr %s590, 8
          %s592 = scalar_lea.vmem [#allocation2], %s591
          %593 = dma.done %s589, 128
        $region44: #{tpu_custom_call.1} parent=39 // pred_fallthru
          _
      $region40: #{tpu_custom_call.1} parent=5 // pred_fallthru
        _
    $region6: #{tpu_custom_call.1} parent=1 // loop_footer
      %s16 = sadd.s32 1, %s12
    $region7: #{tpu_custom_call.1} parent=1 // loop_footer_branch
      %11 = sbr.rel target = $region3
    $region8: #{tpu_custom_call.1} parent=1 // loop_exit
      _
    %594 = vsyncpa [#allocation3], 1
    %s595 = scalar_lea.sflag [#allocation3], 1
    %596 = vsyncpa %s595, 1

</llo_original>
